<compile_context>
chip_gen: v7x
topology: tpu7x:2x2x1
jax: 0.10.0
libtpu: 0.0.40
codegen_flags: <defaults>
</compile_context>

<pallas_src>
import jax
import jax.numpy as jnp
from jax.experimental import pallas as pl
from jax.experimental.pallas import tpu as pltpu

_EPS = 1e-5
_LANES = 128
_TM_MAX = 1024  # big tiles amortize the ~0.35us per-grid-step overhead


def _round_up(x, m):
    return ((x + m - 1) // m) * m


def _choose_row_tile(rows, sublane):
    """Row tile: largest tile capped at _TM_MAX; for big inputs cap further so
    the grid has >= ~8 steps (pipeline overlap on every chip + both v7x
    TensorCores), but never below ~256 rows so per-step overhead stays hidden."""
    tm = min(_TM_MAX, _round_up(rows, sublane))
    min_tile = min(tm, _round_up(256, sublane))
    if rows > 2 * min_tile:
        tm = min(tm, max(min_tile, _round_up(pl.cdiv(rows, 8), sublane)))
    return max(tm, sublane)


# ----------------------------------------------------------------------------
# Kernels
# ----------------------------------------------------------------------------
def _ln_packed_kernel(x_ref, w_ref, b_ref, red_ref, o_ref):
    # x_ref:   (TM, 128) native dtype -- k = 128//C logical rows per physical row.
    # red_ref: (128, 128) bf16 block-diagonal matrix with 1/C inside each CxC
    #          block: v @ red reduces within each C-lane group and broadcasts
    #          the mean back over that group's lanes (reduction on the MXU, so
    #          VMEM traffic stays lane-dense).
    x = x_ref[...].astype(jnp.float32)
    red = red_ref[...]

    def _group_mean(v):
        # ~f32-accurate MXU reduction via a bf16 hi/lo split: two single-pass
        # bf16 matmuls with f32 accumulation (1/C is a power of two -> exact).
        hi = v.astype(jnp.bfloat16)
        lo = (v - hi.astype(jnp.float32)).astype(jnp.bfloat16)
        return (jnp.dot(hi, red, preferred_element_type=jnp.float32)
                + jnp.dot(lo, red, preferred_element_type=jnp.float32))

    mu = _group_mean(x)
    d = x - mu
    var = _group_mean(d * d)
    y = d * jax.lax.rsqrt(var + _EPS) * w_ref[...] + b_ref[...]
    o_ref[...] = y.astype(o_ref.dtype)


def _ln_rowwise_kernel(x_ref, w_ref, b_ref, o_ref):
    # Generic fallback: one logical row per physical row (C not a divisor of 128).
    # TODO(synk): pad/pack channels to a 128-lane-dense output (masked
    # reduction) to avoid vst.msk partial stores if this path is ever hot.
    x = x_ref[...].astype(jnp.float32)
    mu = jnp.mean(x, axis=-1, keepdims=True)
    d = x - mu
    var = jnp.mean(d * d, axis=-1, keepdims=True)
    y = d * jax.lax.rsqrt(var + _EPS) * w_ref[...] + b_ref[...]
    o_ref[...] = y.astype(o_ref.dtype)


# ----------------------------------------------------------------------------
# Wrapper
# ----------------------------------------------------------------------------
def withbias_layernorm(x, weight, bias):
    """LayerNorm over the last axis, matching the PyTorch WithBias_LayerNorm."""
    orig_shape = x.shape
    orig_dtype = x.dtype
    c = orig_shape[-1]

    xf = x.reshape(-1, c)                      # view only, stays in native dtype
    m = xf.shape[0]
    w = weight.astype(jnp.float32).reshape(-1)
    b = bias.astype(jnp.float32).reshape(-1)

    itemsize = jnp.dtype(orig_dtype).itemsize
    sublane = max(8, 32 // max(1, itemsize))   # 8 for f32, 16 for bf16, 32 for int8

    pack = (c <= _LANES) and (_LANES % c == 0)
    k = (_LANES // c) if pack else 1
    p = k * c

    m_k = _round_up(m, k)
    if pack and m_k != m:
        # Rare: logical rows do not pack evenly into 128 lanes (materializes a
        # copy, but only when m % k != 0).
        xf = jnp.pad(xf, ((0, m_k - m), (0, 0)))
    rows = m_k // k
    xp = xf.reshape(rows, p)

    tm = _choose_row_tile(rows, sublane)
    grid = (pl.cdiv(rows, tm),)   # ragged boundary block handled by Pallas

    w_p = jnp.tile(w, (k,)).reshape(1, p)
    b_p = jnp.tile(b, (k,)).reshape(1, p)

    cparams = pltpu.CompilerParams(dimension_semantics=("parallel",))

    if pack:
        # Block-diagonal reduction matrix: k blocks of (1/C) on the diagonal.
        # 1/C is a power of two (C divides 128) -> exact in bf16.
        red = (jnp.kron(jnp.eye(k, dtype=jnp.float32),
                        jnp.ones((c, c), jnp.float32))
               * (1.0 / float(c))).astype(jnp.bfloat16)
        out = pl.pallas_call(
            _ln_packed_kernel,
            out_shape=jax.ShapeDtypeStruct((rows, p), orig_dtype),
            grid=grid,
            in_specs=[pl.BlockSpec((tm, p), lambda i: (i, 0)),
                      pl.BlockSpec((1, p), lambda i: (0, 0)),
                      pl.BlockSpec((1, p), lambda i: (0, 0)),
                      pl.BlockSpec((p, p), lambda i: (0, 0))],
            out_specs=pl.BlockSpec((tm, p), lambda i: (i, 0)),
            compiler_params=cparams,
        )(xp, w_p, b_p, red)
    else:
        out = pl.pallas_call(
            _ln_rowwise_kernel,
            out_shape=jax.ShapeDtypeStruct((rows, p), orig_dtype),
            grid=grid,
            in_specs=[pl.BlockSpec((tm, p), lambda i: (i, 0)),
                      pl.BlockSpec((1, p), lambda i: (0, 0)),
                      pl.BlockSpec((1, p), lambda i: (0, 0))],
            out_specs=pl.BlockSpec((tm, p), lambda i: (i, 0)),
            compiler_params=cparams,
        )(xp, w_p, b_p)

    out = out.reshape(m_k, c)
    if m_k != m:
        out = out[:m]
    return out.reshape(orig_shape)


# ----------------------------------------------------------------------------
if __name__ == "__main__":
    key = jax.random.PRNGKey(0)
    kx, kw, kb = jax.random.split(key, 3)

    def _ref(xv, wv, bv):
        xf32 = xv.astype(jnp.float32)
        mu = jnp.mean(xf32, axis=-1, keepdims=True)
        var = jnp.mean((xf32 - mu) ** 2, axis=-1, keepdims=True)
        return (xf32 - mu) / jnp.sqrt(var + _EPS) * wv + bv

    fwd = jax.jit(withbias_layernorm)

    # Shapes as used inside MKDFusion: tokens = (b, h*w), channels = 64.
    B, HW, C = 2, 16 * 16, 64
    x = jax.random.normal(kx, (B, HW, C), jnp.float32)
    weight = 1.0 + 0.1 * jax.random.normal(kw, (C,), jnp.float32)
    bias = 0.1 * jax.random.normal(kb, (C,), jnp.float32)

    out = fwd(x, weight, bias)
    jax.block_until_ready(out)
    assert out.shape == x.shape and out.dtype == x.dtype
    err = float(jnp.max(jnp.abs(out.astype(jnp.float32) - _ref(x, weight, bias))))
    assert jnp.allclose(out.astype(jnp.float32), _ref(x, weight, bias),
                        atol=1e-4, rtol=1e-4), err

    # bf16 input streamed in native dtype (no wrapper f32 cast), bf16 output.
    xb = x.astype(jnp.bfloat16)
    outb = fwd(xb, weight, bias)
    jax.block_until_ready(outb)
    assert outb.dtype == jnp.bfloat16
    assert jnp.allclose(outb.astype(jnp.float32), _ref(xb, weight, bias),
                        atol=5e-2, rtol=5e-2)

    # Ragged row count -> exercises the cdiv / clipped boundary-block path
    # (no jnp.pad of the whole tensor, no output slice).
    x3 = jax.random.normal(kx, (3, 100, C), jnp.float32)
    out3 = fwd(x3, weight, bias)
    jax.block_until_ready(out3)
    assert jnp.allclose(out3.astype(jnp.float32), _ref(x3, weight, bias),
                        atol=1e-4, rtol=1e-4)

    print("KERNEL_OK")
</pallas_src>

<mosaic_0001>
module attributes {stable_mosaic.version = 11 : i64} {
  func.func @_ln_packed_kernel(%arg0: i32, %arg1: memref<256x128xf32, #tpu.memory_space<vmem>>, %arg2: memref<1x128xf32, #tpu.memory_space<vmem>>, %arg3: memref<1x128xf32, #tpu.memory_space<vmem>>, %arg4: memref<128x128xbf16, #tpu.memory_space<vmem>>, %arg5: memref<256x128xf32, #tpu.memory_space<vmem>>) attributes {dimension_semantics = [#tpu.dimension_semantics<parallel>], iteration_bounds = array<i64: 1>, scalar_prefetch = 0 : i64, scratch_operands = 0 : i64, tpu.core_type = #tpu.core_type<tc>, window_params = [{transform_indices = @transform_0, window_bounds = array<i64: 256, 128>}, {pipeline_mode = #tpu.pipeline_mode<synchronous>, transform_indices = @transform_1, window_bounds = array<i64: 1, 128>}, {pipeline_mode = #tpu.pipeline_mode<synchronous>, transform_indices = @transform_2, window_bounds = array<i64: 1, 128>}, {pipeline_mode = #tpu.pipeline_mode<synchronous>, transform_indices = @transform_3, window_bounds = array<i64: 128, 128>}, {transform_indices = @transform_4, window_bounds = array<i64: 256, 128>}]} {
    %c0 = arith.constant 0 : index
    %c0_0 = arith.constant 0 : index
    %0 = vector.load %arg1[%c0, %c0_0] : memref<256x128xf32, #tpu.memory_space<vmem>>, vector<256x128xf32>
    %c0_1 = arith.constant 0 : index
    %c0_2 = arith.constant 0 : index
    %1 = vector.load %arg4[%c0_1, %c0_2] : memref<128x128xbf16, #tpu.memory_space<vmem>>, vector<128x128xbf16>
    %2 = arith.truncf %0 : vector<256x128xf32> to vector<256x128xbf16>
    %3 = arith.extf %2 : vector<256x128xbf16> to vector<256x128xf32>
    %4 = arith.subf %0, %3 : vector<256x128xf32>
    %5 = arith.truncf %4 : vector<256x128xf32> to vector<256x128xbf16>
    %cst = arith.constant dense<0.000000e+00> : vector<256x128xf32>
    %6 = tpu.matmul %2, %1, %cst {dimension_numbers = #tpu.dot_dimension_numbers<[1], [0], [0], [1], [0, 0, 1, 1], [], []>} : vector<256x128xbf16>, vector<128x128xbf16>, vector<256x128xf32> -> vector<256x128xf32>
    %cst_3 = arith.constant dense<0.000000e+00> : vector<256x128xf32>
    %7 = tpu.matmul %5, %1, %cst_3 {dimension_numbers = #tpu.dot_dimension_numbers<[1], [0], [0], [1], [0, 0, 1, 1], [], []>} : vector<256x128xbf16>, vector<128x128xbf16>, vector<256x128xf32> -> vector<256x128xf32>
    %8 = arith.addf %6, %7 : vector<256x128xf32>
    %9 = arith.subf %0, %8 : vector<256x128xf32>
    %10 = arith.mulf %9, %9 : vector<256x128xf32>
    %11 = arith.truncf %10 : vector<256x128xf32> to vector<256x128xbf16>
    %12 = arith.extf %11 : vector<256x128xbf16> to vector<256x128xf32>
    %13 = arith.subf %10, %12 : vector<256x128xf32>
    %14 = arith.truncf %13 : vector<256x128xf32> to vector<256x128xbf16>
    %cst_4 = arith.constant dense<0.000000e+00> : vector<256x128xf32>
    %15 = tpu.matmul %11, %1, %cst_4 {dimension_numbers = #tpu.dot_dimension_numbers<[1], [0], [0], [1], [0, 0, 1, 1], [], []>} : vector<256x128xbf16>, vector<128x128xbf16>, vector<256x128xf32> -> vector<256x128xf32>
    %cst_5 = arith.constant dense<0.000000e+00> : vector<256x128xf32>
    %16 = tpu.matmul %14, %1, %cst_5 {dimension_numbers = #tpu.dot_dimension_numbers<[1], [0], [0], [1], [0, 0, 1, 1], [], []>} : vector<256x128xbf16>, vector<128x128xbf16>, vector<256x128xf32> -> vector<256x128xf32>
    %17 = arith.addf %15, %16 : vector<256x128xf32>
    %cst_6 = arith.constant 9.99999974E-6 : f32
    %18 = vector.broadcast %cst_6 : f32 to vector<256x128xf32>
    %19 = arith.addf %17, %18 : vector<256x128xf32>
    %20 = math.rsqrt %19 : vector<256x128xf32>
    %21 = arith.mulf %9, %20 : vector<256x128xf32>
    %c0_7 = arith.constant 0 : index
    %c0_8 = arith.constant 0 : index
    %22 = vector.load %arg2[%c0_7, %c0_8] : memref<1x128xf32, #tpu.memory_space<vmem>>, vector<1x128xf32>
    %23 = vector.broadcast %22 : vector<1x128xf32> to vector<256x128xf32>
    %24 = arith.mulf %21, %23 : vector<256x128xf32>
    %c0_9 = arith.constant 0 : index
    %c0_10 = arith.constant 0 : index
    %25 = vector.load %arg3[%c0_9, %c0_10] : memref<1x128xf32, #tpu.memory_space<vmem>>, vector<1x128xf32>
    %26 = vector.broadcast %25 : vector<1x128xf32> to vector<256x128xf32>
    %27 = arith.addf %24, %26 : vector<256x128xf32>
    %c0_11 = arith.constant 0 : index
    %c0_12 = arith.constant 0 : index
    %28 = vector.load %arg5[%c0_11, %c0_12] : memref<256x128xf32, #tpu.memory_space<vmem>>, vector<256x128xf32>
    tpu.vector_store %arg5[%c0_11, %c0_12], %27 {strides = array<i32>} : memref<256x128xf32, #tpu.memory_space<vmem>>, vector<256x128xf32>,
    return
  }
  func.func @transform_0(%arg0: i32) -> (i32, i32) {
    %c0_i32 = arith.constant 0 : i32
    %c0_i32_0 = arith.constant 0 : i32
    return %arg0, %c0_i32 : i32, i32
  }
  func.func @transform_1(%arg0: i32) -> (i32, i32) {
    %c0_i32 = arith.constant 0 : i32
    %c0_i32_0 = arith.constant 0 : i32
    %c0_i32_1 = arith.constant 0 : i32
    return %c0_i32, %c0_i32_0 : i32, i32
  }
  func.func @transform_2(%arg0: i32) -> (i32, i32) {
    %c0_i32 = arith.constant 0 : i32
    %c0_i32_0 = arith.constant 0 : i32
    %c0_i32_1 = arith.constant 0 : i32
    return %c0_i32, %c0_i32_0 : i32, i32
  }
  func.func @transform_3(%arg0: i32) -> (i32, i32) {
    %c0_i32 = arith.constant 0 : i32
    %c0_i32_0 = arith.constant 0 : i32
    %c0_i32_1 = arith.constant 0 : i32
    return %c0_i32, %c0_i32_0 : i32, i32
  }
  func.func @transform_4(%arg0: i32) -> (i32, i32) {
    %c0_i32 = arith.constant 0 : i32
    %c0_i32_0 = arith.constant 0 : i32
    return %arg0, %c0_i32 : i32, i32
  }
}

</mosaic_0001>

<llo_original>
// kernel: tile.13
$region0: #{tile.13}
  #allocation0 [shape = 's32[1]{0}', space=sflag, size = 0x4, scoped, tag = 'scoped memory for tile.13']
  %s0 = inlined_call_operand.vmem [shape: f32[64], index: 0, kind: input, shape index: {}]
  %s1 = inlined_call_operand.vmem [shape: f32[2,64], index: 1, kind: output, shape index: {}]
  // Predicated region
  $region2: #{tile.13} parent=0 // pred_check
    _
  $region3: #{tile.13} parent=0 // pred_check_branch
    %3 = sbr.rel (0) target = $region5
  $region4: #{tile.13} parent=0 // pred_region
    _
  $region5: #{tile.13} parent=0 // pred_fallthru
    _
  %v4 = vld [vmem:[%s0] ss:$0 sm:$0xff]
  %5 = vst [vmem:[%s1] sm:$0x3] %v4

// kernel: tile.14
$region0: #{tile.14}
  %s0 = inlined_call_operand.vmem [shape: f32[2,64], index: 0, kind: input, shape index: {}]
  %s1 = inlined_call_operand.vmem [shape: f32[1,128], index: 1, kind: output, shape index: {}]
  $region1: #{tile.14} parent=0
    #allocation0 [shape = 'u8[4096]{0}', space=vmem, size = 0x1000, scoped, tag = 'scoped mem for output reshape']
    #allocation1 [shape = 'u8[4096]{0}', space=vmem, size = 0x1000, scoped, tag = 'scoped mem for input reshape']
    %s3 = sshllo.u32 0, 2
    %v4 = vld [vmem:[%s0] sm:%s3]
    %5 = vst [vmem:[#allocation1] sm:%s3] %v4
    %v6 = vld [vmem:[#allocation1] sm:$0x1]
    %vm7 = vcmask 523264
    %8 = vst.msk [vmem:[#allocation0] sm:$0x1] %vm7, %v6
    %s9 = scalar_lea.vmem [#allocation1], 1
    %v10 = vld [vmem:[%s9] sm:$0x1]
    %11 = vrot.lane.b32.xlu0 %v10, 64
    %v12 = vpop.permute.xlu0 %11
    %vm13 = vcmask 1048064
    %14 = vst.msk [vmem:[#allocation0] sm:$0x1] %vm13, %v12
    %s16 = sshllo.u32 0, 1
    %v18 = vld [vmem:[#allocation0] sm:%s16]
    %s19 = sshllo.u32 0, 1
    %20 = vst [vmem:[%s1] sm:%s19] %v18

// kernel: withbias_layernorm.1
$region0: #{withbias_layernorm.1}
  #allocation0 [shape = 'u32[]', space=smem, size = 0x4, offset = 0x4, fixed_abs, tag = 'smem constant byte address 0x4 - core index']
  #allocation1 [shape = 'u32[144,128]{1,0:T(1,128)}', space=vmem, size = 0x12000, scoped, tag = 'internal scratch']
  %s0 = inlined_call_operand.vmem [shape: f32[256,128], index: 0, kind: input, shape index: {}]
  %s1 = inlined_call_operand.vmem [shape: f32[1,128], index: 1, kind: input, shape index: {}]
  %s2 = inlined_call_operand.vmem [shape: f32[1,128], index: 2, kind: input, shape index: {}]
  %s3 = inlined_call_operand.vmem [shape: bf16[128,128], index: 3, kind: input, shape index: {}]
  %s4 = inlined_call_operand.vmem [shape: f32[256,128], index: 4, kind: output, shape index: {}]
  %s5 = sld [smem:[#allocation0]]
  $region26: #{withbias_layernorm.1} parent=0
    _
  %s7 = ssub.s32 1, %s5
  %s8 = scalar_select 0, %s7, %s5
  // Predicated region
  $region2: #{withbias_layernorm.1} parent=0 // pred_check
    _
  $region3: #{withbias_layernorm.1} parent=0 // pred_check_branch
    %10 = sbr.rel (0) target = $region5
  $region4: #{withbias_layernorm.1} parent=0 // pred_region
    _
  $region5: #{withbias_layernorm.1} parent=0 // pred_fallthru
    _
  // Predicated region
  $region6: #{withbias_layernorm.1} parent=0 // pred_check
    _
  $region7: #{withbias_layernorm.1} parent=0 // pred_check_branch
    %12 = sbr.rel (0) target = $region9
  $region8: #{withbias_layernorm.1} parent=0 // pred_region
    _
  $region9: #{withbias_layernorm.1} parent=0 // pred_fallthru
    _
  // Predicated region
  $region10: #{withbias_layernorm.1} parent=0 // pred_check
    _
  $region11: #{withbias_layernorm.1} parent=0 // pred_check_branch
    %14 = sbr.rel (0) target = $region13
  $region12: #{withbias_layernorm.1} parent=0 // pred_region
    _
  $region13: #{withbias_layernorm.1} parent=0 // pred_fallthru
    _
  // Predicated region
  $region14: #{withbias_layernorm.1} parent=0 // pred_check
    _
  $region15: #{withbias_layernorm.1} parent=0 // pred_check_branch
    %16 = sbr.rel (0) target = $region17
  $region16: #{withbias_layernorm.1} parent=0 // pred_region
    _
  $region17: #{withbias_layernorm.1} parent=0 // pred_fallthru
    _
  %v18 = vld [vmem:[%s0] sm:$0xff]
  %v19 = vld [vmem:[%s0 + $0x8] sm:$0xff]
  %v20 = vld [vmem:[%s0 + $0x10] sm:$0xff]
  %v21 = vld [vmem:[%s0 + $0x18] sm:$0xff]
  %v22 = vld [vmem:[%s0 + $0x20] sm:$0xff]
  %v23 = vld [vmem:[%s0 + $0x28] sm:$0xff]
  %v24 = vld [vmem:[%s0 + $0x30] sm:$0xff]
  %v25 = vld [vmem:[%s0 + $0x38] sm:$0xff]
  %v26 = vld [vmem:[%s0 + $0x40] sm:$0xff]
  %v27 = vld [vmem:[%s0 + $0x48] sm:$0xff]
  %v28 = vld [vmem:[%s0 + $0x50] sm:$0xff]
  %v29 = vld [vmem:[%s0 + $0x58] sm:$0xff]
  %v30 = vld [vmem:[%s0 + $0x60] sm:$0xff]
  %v31 = vld [vmem:[%s0 + $0x68] sm:$0xff]
  %v32 = vld [vmem:[%s0 + $0x70] sm:$0xff]
  %v33 = vld [vmem:[%s0 + $0x78] sm:$0xff]
  %v34 = vld [vmem:[%s0 + $0x80] sm:$0xff]
  %v35 = vld [vmem:[%s0 + $0x88] sm:$0xff]
  %v36 = vld [vmem:[%s0 + $0x90] sm:$0xff]
  %v37 = vld [vmem:[%s0 + $0x98] sm:$0xff]
  %v38 = vld [vmem:[%s0 + $0xa0] sm:$0xff]
  %v39 = vld [vmem:[%s0 + $0xa8] sm:$0xff]
  %v40 = vld [vmem:[%s0 + $0xb0] sm:$0xff]
  %v41 = vld [vmem:[%s0 + $0xb8] sm:$0xff]
  %v42 = vld [vmem:[%s0 + $0xc0] sm:$0xff]
  %v43 = vld [vmem:[%s0 + $0xc8] sm:$0xff]
  %v44 = vld [vmem:[%s0 + $0xd0] sm:$0xff]
  %v45 = vld [vmem:[%s0 + $0xd8] sm:$0xff]
  %v46 = vld [vmem:[%s0 + $0xe0] sm:$0xff]
  %v47 = vld [vmem:[%s0 + $0xe8] sm:$0xff]
  %v48 = vld [vmem:[%s0 + $0xf0] sm:$0xff]
  %v49 = vld [vmem:[%s0 + $0xf8] sm:$0xff]
  %v50 = vld [vmem:[%s3] sm:$0xf]
  %v51 = vld [vmem:[%s3 + $0x4] sm:$0xf]
  %v52 = vld [vmem:[%s3 + $0x8] sm:$0xf]
  %v53 = vld [vmem:[%s3 + $0xc] sm:$0xf]
  %v54 = vld [vmem:[%s3 + $0x10] sm:$0xf]
  %v55 = vld [vmem:[%s3 + $0x14] sm:$0xf]
  %v56 = vld [vmem:[%s3 + $0x18] sm:$0xf]
  %v57 = vld [vmem:[%s3 + $0x1c] sm:$0xf]
  %v58 = vld [vmem:[%s3 + $0x20] sm:$0xf]
  %v59 = vld [vmem:[%s3 + $0x24] sm:$0xf]
  %v60 = vld [vmem:[%s3 + $0x28] sm:$0xf]
  %v61 = vld [vmem:[%s3 + $0x2c] sm:$0xf]
  %v62 = vld [vmem:[%s3 + $0x30] sm:$0xf]
  %v63 = vld [vmem:[%s3 + $0x34] sm:$0xf]
  %v64 = vld [vmem:[%s3 + $0x38] sm:$0xf]
  %v65 = vld [vmem:[%s3 + $0x3c] sm:$0xf]
  %v66 = vpack.c.bf16 %v19, %v18
  %v67 = vpack.c.bf16 %v21, %v20
  %v68 = vpack.c.bf16 %v23, %v22
  %v69 = vpack.c.bf16 %v25, %v24
  %v70 = vpack.c.bf16 %v27, %v26
  %v71 = vpack.c.bf16 %v29, %v28
  %v72 = vpack.c.bf16 %v31, %v30
  %v73 = vpack.c.bf16 %v33, %v32
  %v74 = vpack.c.bf16 %v35, %v34
  %v75 = vpack.c.bf16 %v37, %v36
  %v76 = vpack.c.bf16 %v39, %v38
  %v77 = vpack.c.bf16 %v41, %v40
  %v78 = vpack.c.bf16 %v43, %v42
  %v79 = vpack.c.bf16 %v45, %v44
  %v80 = vpack.c.bf16 %v47, %v46
  %v81 = vpack.c.bf16 %v49, %v48
  %v82 = vunpack.c.l.bf16 %v66
  %v83 = vunpack.c.h.bf16 %v66
  %v84 = vunpack.c.l.bf16 %v67
  %v85 = vunpack.c.h.bf16 %v67
  %v86 = vunpack.c.l.bf16 %v68
  %v87 = vunpack.c.h.bf16 %v68
  %v88 = vunpack.c.l.bf16 %v69
  %v89 = vunpack.c.h.bf16 %v69
  %v90 = vunpack.c.l.bf16 %v70
  %v91 = vunpack.c.h.bf16 %v70
  %v92 = vunpack.c.l.bf16 %v71
  %v93 = vunpack.c.h.bf16 %v71
  %v94 = vunpack.c.l.bf16 %v72
  %v95 = vunpack.c.h.bf16 %v72
  %v96 = vunpack.c.l.bf16 %v73
  %v97 = vunpack.c.h.bf16 %v73
  %v98 = vunpack.c.l.bf16 %v74
  %v99 = vunpack.c.h.bf16 %v74
  %v100 = vunpack.c.l.bf16 %v75
  %v101 = vunpack.c.h.bf16 %v75
  %v102 = vunpack.c.l.bf16 %v76
  %v103 = vunpack.c.h.bf16 %v76
  %v104 = vunpack.c.l.bf16 %v77
  %v105 = vunpack.c.h.bf16 %v77
  %v106 = vunpack.c.l.bf16 %v78
  %v107 = vunpack.c.h.bf16 %v78
  %v108 = vunpack.c.l.bf16 %v79
  %v109 = vunpack.c.h.bf16 %v79
  %v110 = vunpack.c.l.bf16 %v80
  %v111 = vunpack.c.h.bf16 %v80
  %v112 = vunpack.c.l.bf16 %v81
  %v113 = vunpack.c.h.bf16 %v81
  %v114 = vsub.f32 %v18, %v82
  %v115 = vsub.f32 %v19, %v83
  %v116 = vsub.f32 %v20, %v84
  %v117 = vsub.f32 %v21, %v85
  %v118 = vsub.f32 %v22, %v86
  %v119 = vsub.f32 %v23, %v87
  %v120 = vsub.f32 %v24, %v88
  %v121 = vsub.f32 %v25, %v89
  %v122 = vsub.f32 %v26, %v90
  %v123 = vsub.f32 %v27, %v91
  %v124 = vsub.f32 %v28, %v92
  %v125 = vsub.f32 %v29, %v93
  %v126 = vsub.f32 %v30, %v94
  %v127 = vsub.f32 %v31, %v95
  %v128 = vsub.f32 %v32, %v96
  %v129 = vsub.f32 %v33, %v97
  %v130 = vsub.f32 %v34, %v98
  %v131 = vsub.f32 %v35, %v99
  %v132 = vsub.f32 %v36, %v100
  %v133 = vsub.f32 %v37, %v101
  %v134 = vsub.f32 %v38, %v102
  %v135 = vsub.f32 %v39, %v103
  %v136 = vsub.f32 %v40, %v104
  %v137 = vsub.f32 %v41, %v105
  %v138 = vsub.f32 %v42, %v106
  %v139 = vsub.f32 %v43, %v107
  %v140 = vsub.f32 %v44, %v108
  %v141 = vsub.f32 %v45, %v109
  %v142 = vsub.f32 %v46, %v110
  %v143 = vsub.f32 %v47, %v111
  %v144 = vsub.f32 %v48, %v112
  %v145 = vsub.f32 %v49, %v113
  %v146 = vpack.c.bf16 %v115, %v114
  %v147 = vpack.c.bf16 %v117, %v116
  %v148 = vpack.c.bf16 %v119, %v118
  %v149 = vpack.c.bf16 %v121, %v120
  %v150 = vpack.c.bf16 %v123, %v122
  %v151 = vpack.c.bf16 %v125, %v124
  %v152 = vpack.c.bf16 %v127, %v126
  %v153 = vpack.c.bf16 %v129, %v128
  %v154 = vpack.c.bf16 %v131, %v130
  %v155 = vpack.c.bf16 %v133, %v132
  %v156 = vpack.c.bf16 %v135, %v134
  %v157 = vpack.c.bf16 %v137, %v136
  %v158 = vpack.c.bf16 %v139, %v138
  %v159 = vpack.c.bf16 %v141, %v140
  %v160 = vpack.c.bf16 %v143, %v142
  %v161 = vpack.c.bf16 %v145, %v144
  %v178 = vunpack.c.l.b16 %v50
  %v179 = vunpack.c.l.b16 %v51
  %v180 = vunpack.c.l.b16 %v52
  %v181 = vunpack.c.l.b16 %v53
  %v182 = vunpack.c.l.b16 %v54
  %v183 = vunpack.c.l.b16 %v55
  %v184 = vunpack.c.l.b16 %v56
  %v185 = vunpack.c.l.b16 %v57
  %v186 = vunpack.c.l.b16 %v58
  %v187 = vunpack.c.l.b16 %v59
  %v188 = vunpack.c.l.b16 %v60
  %v189 = vunpack.c.l.b16 %v61
  %v190 = vunpack.c.l.b16 %v62
  %v191 = vunpack.c.l.b16 %v63
  %v192 = vunpack.c.l.b16 %v64
  %v193 = vunpack.c.l.b16 %v65
  %v194 = vpack.c.b16 %v179, %v178
  %v195 = vpack.c.b16 %v181, %v180
  %v196 = vpack.c.b16 %v183, %v182
  %v197 = vpack.c.b16 %v185, %v184
  %v198 = vpack.c.b16 %v187, %v186
  %v199 = vpack.c.b16 %v189, %v188
  %v200 = vpack.c.b16 %v191, %v190
  %v201 = vpack.c.b16 %v193, %v192
  %210 = vmatprep.subr.bf16.mxu0 0
  %211 = vmatpush1.bf16.msra.mxu0 %v194
  %212 = vmatprep.subr.bf16.mxu0 0
  %213 = vmatpush1.bf16.msra.mxu0 %v195
  %214 = vmatprep.subr.bf16.mxu0 0
  %215 = vmatpush1.bf16.msra.mxu0 %v196
  %216 = vmatprep.subr.bf16.mxu0 0
  %217 = vmatpush1.bf16.msra.mxu0 %v197
  %218 = vmatprep.subr.bf16.mxu0 0
  %219 = vmatpush1.bf16.msra.mxu0 %v198
  %220 = vmatprep.subr.bf16.mxu0 0
  %221 = vmatpush1.bf16.msra.mxu0 %v199
  %222 = vmatprep.subr.bf16.mxu0 0
  %223 = vmatpush1.bf16.msra.mxu0 %v200
  %224 = vmatprep.subr.bf16.mxu0 0
  %225 = vmatpush1.bf16.msra.mxu0 %v201
  %226 = vmatprep.subr.bf16.mxu0 0
  %227 = vmatpush1.bf16.msra.mxu0 0
  %228 = vmatprep.subr.bf16.mxu0 0
  %229 = vmatpush1.bf16.msra.mxu0 0
  %230 = vmatprep.subr.bf16.mxu0 0
  %231 = vmatpush1.bf16.msra.mxu0 0
  %232 = vmatprep.subr.bf16.mxu0 0
  %233 = vmatpush1.bf16.msra.mxu0 0
  %234 = vmatprep.subr.bf16.mxu0 0
  %235 = vmatpush1.bf16.msra.mxu0 0
  %236 = vmatprep.subr.bf16.mxu0 0
  %237 = vmatpush1.bf16.msra.mxu0 0
  %238 = vmatprep.subr.bf16.mxu0 0
  %239 = vmatpush1.bf16.msra.mxu0 0
  %240 = vmatprep.subr.bf16.mxu0 0
  %241 = vmatpush1.bf16.msra.mxu0 0
  %242 = vmatprep.mubr.bf16.mxu0 0
  %243 = vmatmul.mubr.bf16.gmra.mrb[0].mxu0 %v146
  %v244 = vpop.f32.mrb[0].mxu0
  %v245 = vadd.f32 0.0, %v244
  %v246 = vpop.f32.mrb[0].mxu0
  %v247 = vpop.f32.mrb[0].mxu0
  %v248 = vadd.f32 0.0, %v247
  %v249 = vpop.f32.mrb[0].mxu0
  %250 = vmatprep.mubr.bf16.mxu0 0
  %251 = vmatmul.mubr.bf16.gmra.mrb[0].mxu0 %v147
  %v252 = vpop.f32.mrb[0].mxu0
  %v253 = vadd.f32 0.0, %v252
  %v254 = vpop.f32.mrb[0].mxu0
  %v255 = vpop.f32.mrb[0].mxu0
  %v256 = vadd.f32 0.0, %v255
  %v257 = vpop.f32.mrb[0].mxu0
  %258 = vmatprep.mubr.bf16.mxu0 0
  %259 = vmatmul.mubr.bf16.gmra.mrb[0].mxu0 %v148
  %v260 = vpop.f32.mrb[0].mxu0
  %v261 = vadd.f32 0.0, %v260
  %v262 = vpop.f32.mrb[0].mxu0
  %v263 = vpop.f32.mrb[0].mxu0
  %v264 = vadd.f32 0.0, %v263
  %v265 = vpop.f32.mrb[0].mxu0
  %266 = vmatprep.mubr.bf16.mxu0 0
  %267 = vmatmul.mubr.bf16.gmra.mrb[0].mxu0 %v149
  %v268 = vpop.f32.mrb[0].mxu0
  %v269 = vadd.f32 0.0, %v268
  %v270 = vpop.f32.mrb[0].mxu0
  %v271 = vpop.f32.mrb[0].mxu0
  %v272 = vadd.f32 0.0, %v271
  %v273 = vpop.f32.mrb[0].mxu0
  %274 = vmatprep.mubr.bf16.mxu0 0
  %275 = vmatmul.mubr.bf16.gmra.mrb[0].mxu0 %v150
  %v276 = vpop.f32.mrb[0].mxu0
  %v277 = vadd.f32 0.0, %v276
  %v278 = vpop.f32.mrb[0].mxu0
  %v279 = vpop.f32.mrb[0].mxu0
  %v280 = vadd.f32 0.0, %v279
  %v281 = vpop.f32.mrb[0].mxu0
  %282 = vmatprep.mubr.bf16.mxu0 0
  %283 = vmatmul.mubr.bf16.gmra.mrb[0].mxu0 %v151
  %v284 = vpop.f32.mrb[0].mxu0
  %v285 = vadd.f32 0.0, %v284
  %v286 = vpop.f32.mrb[0].mxu0
  %v287 = vpop.f32.mrb[0].mxu0
  %v288 = vadd.f32 0.0, %v287
  %v289 = vpop.f32.mrb[0].mxu0
  %290 = vmatprep.mubr.bf16.mxu0 0
  %291 = vmatmul.mubr.bf16.gmra.mrb[0].mxu0 %v152
  %v292 = vpop.f32.mrb[0].mxu0
  %v293 = vadd.f32 0.0, %v292
  %v294 = vpop.f32.mrb[0].mxu0
  %v295 = vpop.f32.mrb[0].mxu0
  %v296 = vadd.f32 0.0, %v295
  %v297 = vpop.f32.mrb[0].mxu0
  %298 = vmatprep.mubr.bf16.mxu0 0
  %299 = vmatmul.mubr.bf16.gmra.mrb[0].mxu0 %v153
  %v300 = vpop.f32.mrb[0].mxu0
  %v301 = vadd.f32 0.0, %v300
  %v302 = vpop.f32.mrb[0].mxu0
  %v303 = vpop.f32.mrb[0].mxu0
  %v304 = vadd.f32 0.0, %v303
  %v305 = vpop.f32.mrb[0].mxu0
  %306 = vmatprep.mubr.bf16.mxu0 0
  %307 = vmatmul.mubr.bf16.gmra.mrb[0].mxu0 %v154
  %v308 = vpop.f32.mrb[0].mxu0
  %v309 = vadd.f32 0.0, %v308
  %v310 = vpop.f32.mrb[0].mxu0
  %v311 = vpop.f32.mrb[0].mxu0
  %v312 = vadd.f32 0.0, %v311
  %v313 = vpop.f32.mrb[0].mxu0
  %314 = vmatprep.mubr.bf16.mxu0 0
  %315 = vmatmul.mubr.bf16.gmra.mrb[0].mxu0 %v155
  %v316 = vpop.f32.mrb[0].mxu0
  %v317 = vadd.f32 0.0, %v316
  %v318 = vpop.f32.mrb[0].mxu0
  %v319 = vpop.f32.mrb[0].mxu0
  %v320 = vadd.f32 0.0, %v319
  %v321 = vpop.f32.mrb[0].mxu0
  %322 = vmatprep.mubr.bf16.mxu0 0
  %323 = vmatmul.mubr.bf16.gmra.mrb[0].mxu0 %v156
  %v324 = vpop.f32.mrb[0].mxu0
  %v325 = vadd.f32 0.0, %v324
  %v326 = vpop.f32.mrb[0].mxu0
  %v327 = vpop.f32.mrb[0].mxu0
  %v328 = vadd.f32 0.0, %v327
  %v329 = vpop.f32.mrb[0].mxu0
  %330 = vmatprep.mubr.bf16.mxu0 0
  %331 = vmatmul.mubr.bf16.gmra.mrb[0].mxu0 %v157
  %v332 = vpop.f32.mrb[0].mxu0
  %v333 = vadd.f32 0.0, %v332
  %v334 = vpop.f32.mrb[0].mxu0
  %v335 = vpop.f32.mrb[0].mxu0
  %v336 = vadd.f32 0.0, %v335
  %v337 = vpop.f32.mrb[0].mxu0
  %338 = vmatprep.mubr.bf16.mxu0 0
  %339 = vmatmul.mubr.bf16.gmra.mrb[0].mxu0 %v158
  %v340 = vpop.f32.mrb[0].mxu0
  %v341 = vadd.f32 0.0, %v340
  %v342 = vpop.f32.mrb[0].mxu0
  %v343 = vpop.f32.mrb[0].mxu0
  %v344 = vadd.f32 0.0, %v343
  %v345 = vpop.f32.mrb[0].mxu0
  %346 = vmatprep.mubr.bf16.mxu0 0
  %347 = vmatmul.mubr.bf16.gmra.mrb[0].mxu0 %v159
  %v348 = vpop.f32.mrb[0].mxu0
  %v349 = vadd.f32 0.0, %v348
  %v350 = vpop.f32.mrb[0].mxu0
  %v351 = vpop.f32.mrb[0].mxu0
  %v352 = vadd.f32 0.0, %v351
  %v353 = vpop.f32.mrb[0].mxu0
  %354 = vmatprep.mubr.bf16.mxu0 0
  %355 = vmatmul.mubr.bf16.gmra.mrb[0].mxu0 %v160
  %v356 = vpop.f32.mrb[0].mxu0
  %v357 = vadd.f32 0.0, %v356
  %v358 = vpop.f32.mrb[0].mxu0
  %v359 = vpop.f32.mrb[0].mxu0
  %v360 = vadd.f32 0.0, %v359
  %v361 = vpop.f32.mrb[0].mxu0
  %362 = vmatprep.mubr.bf16.mxu0 0
  %363 = vmatmul.mubr.bf16.gmra.mrb[0].mxu0 %v161
  %v364 = vpop.f32.mrb[0].mxu0
  %v365 = vadd.f32 0.0, %v364
  %v366 = vpop.f32.mrb[0].mxu0
  %v367 = vpop.f32.mrb[0].mxu0
  %v368 = vadd.f32 0.0, %v367
  %v369 = vpop.f32.mrb[0].mxu0
  %370 = vdwg.mxu0
  %371 = vmatprep.subr.bf16.mxu0 0
  %372 = vmatpush1.bf16.msra.mxu0 %v194
  %373 = vmatprep.subr.bf16.mxu0 0
  %374 = vmatpush1.bf16.msra.mxu0 %v195
  %375 = vmatprep.subr.bf16.mxu0 0
  %376 = vmatpush1.bf16.msra.mxu0 %v196
  %377 = vmatprep.subr.bf16.mxu0 0
  %378 = vmatpush1.bf16.msra.mxu0 %v197
  %379 = vmatprep.subr.bf16.mxu0 0
  %380 = vmatpush1.bf16.msra.mxu0 %v198
  %381 = vmatprep.subr.bf16.mxu0 0
  %382 = vmatpush1.bf16.msra.mxu0 %v199
  %383 = vmatprep.subr.bf16.mxu0 0
  %384 = vmatpush1.bf16.msra.mxu0 %v200
  %385 = vmatprep.subr.bf16.mxu0 0
  %386 = vmatpush1.bf16.msra.mxu0 %v201
  %387 = vmatprep.subr.bf16.mxu0 0
  %388 = vmatpush1.bf16.msra.mxu0 0
  %389 = vmatprep.subr.bf16.mxu0 0
  %390 = vmatpush1.bf16.msra.mxu0 0
  %391 = vmatprep.subr.bf16.mxu0 0
  %392 = vmatpush1.bf16.msra.mxu0 0
  %393 = vmatprep.subr.bf16.mxu0 0
  %394 = vmatpush1.bf16.msra.mxu0 0
  %395 = vmatprep.subr.bf16.mxu0 0
  %396 = vmatpush1.bf16.msra.mxu0 0
  %397 = vmatprep.subr.bf16.mxu0 0
  %398 = vmatpush1.bf16.msra.mxu0 0
  %399 = vmatprep.subr.bf16.mxu0 0
  %400 = vmatpush1.bf16.msra.mxu0 0
  %401 = vmatprep.subr.bf16.mxu0 0
  %402 = vmatpush1.bf16.msra.mxu0 0
  %403 = vmatprep.mubr.bf16.mxu0 0
  %404 = vmatmul.mubr.bf16.gmra.mrb[0].mxu0 %v66
  %v405 = vpop.f32.mrb[0].mxu0
  %v406 = vadd.f32 %v245, %v405
  %v407 = vpop.f32.mrb[0].mxu0
  %v408 = vpop.f32.mrb[0].mxu0
  %v409 = vadd.f32 %v248, %v408
  %v410 = vpop.f32.mrb[0].mxu0
  %411 = vmatprep.mubr.bf16.mxu0 0
  %412 = vmatmul.mubr.bf16.gmra.mrb[0].mxu0 %v67
  %v413 = vpop.f32.mrb[0].mxu0
  %v414 = vadd.f32 %v253, %v413
  %v415 = vpop.f32.mrb[0].mxu0
  %v416 = vpop.f32.mrb[0].mxu0
  %v417 = vadd.f32 %v256, %v416
  %v418 = vpop.f32.mrb[0].mxu0
  %419 = vmatprep.mubr.bf16.mxu0 0
  %420 = vmatmul.mubr.bf16.gmra.mrb[0].mxu0 %v68
  %v421 = vpop.f32.mrb[0].mxu0
  %v422 = vadd.f32 %v261, %v421
  %v423 = vpop.f32.mrb[0].mxu0
  %v424 = vpop.f32.mrb[0].mxu0
  %v425 = vadd.f32 %v264, %v424
  %v426 = vpop.f32.mrb[0].mxu0
  %427 = vmatprep.mubr.bf16.mxu0 0
  %428 = vmatmul.mubr.bf16.gmra.mrb[0].mxu0 %v69
  %v429 = vpop.f32.mrb[0].mxu0
  %v430 = vadd.f32 %v269, %v429
  %v431 = vpop.f32.mrb[0].mxu0
  %v432 = vpop.f32.mrb[0].mxu0
  %v433 = vadd.f32 %v272, %v432
  %v434 = vpop.f32.mrb[0].mxu0
  %435 = vmatprep.mubr.bf16.mxu0 0
  %436 = vmatmul.mubr.bf16.gmra.mrb[0].mxu0 %v70
  %v437 = vpop.f32.mrb[0].mxu0
  %v438 = vadd.f32 %v277, %v437
  %v439 = vpop.f32.mrb[0].mxu0
  %v440 = vpop.f32.mrb[0].mxu0
  %v441 = vadd.f32 %v280, %v440
  %v442 = vpop.f32.mrb[0].mxu0
  %443 = vmatprep.mubr.bf16.mxu0 0
  %444 = vmatmul.mubr.bf16.gmra.mrb[0].mxu0 %v71
  %v445 = vpop.f32.mrb[0].mxu0
  %v446 = vadd.f32 %v285, %v445
  %v447 = vpop.f32.mrb[0].mxu0
  %v448 = vpop.f32.mrb[0].mxu0
  %v449 = vadd.f32 %v288, %v448
  %v450 = vpop.f32.mrb[0].mxu0
  %451 = vmatprep.mubr.bf16.mxu0 0
  %452 = vmatmul.mubr.bf16.gmra.mrb[0].mxu0 %v72
  %v453 = vpop.f32.mrb[0].mxu0
  %v454 = vadd.f32 %v293, %v453
  %v455 = vpop.f32.mrb[0].mxu0
  %v456 = vpop.f32.mrb[0].mxu0
  %v457 = vadd.f32 %v296, %v456
  %v458 = vpop.f32.mrb[0].mxu0
  %459 = vmatprep.mubr.bf16.mxu0 0
  %460 = vmatmul.mubr.bf16.gmra.mrb[0].mxu0 %v73
  %v461 = vpop.f32.mrb[0].mxu0
  %v462 = vadd.f32 %v301, %v461
  %v463 = vpop.f32.mrb[0].mxu0
  %v464 = vpop.f32.mrb[0].mxu0
  %v465 = vadd.f32 %v304, %v464
  %v466 = vpop.f32.mrb[0].mxu0
  %467 = vmatprep.mubr.bf16.mxu0 0
  %468 = vmatmul.mubr.bf16.gmra.mrb[0].mxu0 %v74
  %v469 = vpop.f32.mrb[0].mxu0
  %v470 = vadd.f32 %v309, %v469
  %v471 = vpop.f32.mrb[0].mxu0
  %v472 = vpop.f32.mrb[0].mxu0
  %v473 = vadd.f32 %v312, %v472
  %v474 = vpop.f32.mrb[0].mxu0
  %475 = vmatprep.mubr.bf16.mxu0 0
  %476 = vmatmul.mubr.bf16.gmra.mrb[0].mxu0 %v75
  %v477 = vpop.f32.mrb[0].mxu0
  %v478 = vadd.f32 %v317, %v477
  %v479 = vpop.f32.mrb[0].mxu0
  %v480 = vpop.f32.mrb[0].mxu0
  %v481 = vadd.f32 %v320, %v480
  %v482 = vpop.f32.mrb[0].mxu0
  %483 = vmatprep.mubr.bf16.mxu0 0
  %484 = vmatmul.mubr.bf16.gmra.mrb[0].mxu0 %v76
  %v485 = vpop.f32.mrb[0].mxu0
  %v486 = vadd.f32 %v325, %v485
  %v487 = vpop.f32.mrb[0].mxu0
  %v488 = vpop.f32.mrb[0].mxu0
  %v489 = vadd.f32 %v328, %v488
  %v490 = vpop.f32.mrb[0].mxu0
  %491 = vmatprep.mubr.bf16.mxu0 0
  %492 = vmatmul.mubr.bf16.gmra.mrb[0].mxu0 %v77
  %v493 = vpop.f32.mrb[0].mxu0
  %v494 = vadd.f32 %v333, %v493
  %v495 = vpop.f32.mrb[0].mxu0
  %v496 = vpop.f32.mrb[0].mxu0
  %v497 = vadd.f32 %v336, %v496
  %v498 = vpop.f32.mrb[0].mxu0
  %499 = vmatprep.mubr.bf16.mxu0 0
  %500 = vmatmul.mubr.bf16.gmra.mrb[0].mxu0 %v78
  %v501 = vpop.f32.mrb[0].mxu0
  %v502 = vadd.f32 %v341, %v501
  %v503 = vpop.f32.mrb[0].mxu0
  %v504 = vpop.f32.mrb[0].mxu0
  %v505 = vadd.f32 %v344, %v504
  %v506 = vpop.f32.mrb[0].mxu0
  %507 = vmatprep.mubr.bf16.mxu0 0
  %508 = vmatmul.mubr.bf16.gmra.mrb[0].mxu0 %v79
  %v509 = vpop.f32.mrb[0].mxu0
  %v510 = vadd.f32 %v349, %v509
  %v511 = vpop.f32.mrb[0].mxu0
  %v512 = vpop.f32.mrb[0].mxu0
  %v513 = vadd.f32 %v352, %v512
  %v514 = vpop.f32.mrb[0].mxu0
  %515 = vmatprep.mubr.bf16.mxu0 0
  %516 = vmatmul.mubr.bf16.gmra.mrb[0].mxu0 %v80
  %v517 = vpop.f32.mrb[0].mxu0
  %v518 = vadd.f32 %v357, %v517
  %v519 = vpop.f32.mrb[0].mxu0
  %v520 = vpop.f32.mrb[0].mxu0
  %v521 = vadd.f32 %v360, %v520
  %v522 = vpop.f32.mrb[0].mxu0
  %523 = vmatprep.mubr.bf16.mxu0 0
  %524 = vmatmul.mubr.bf16.gmra.mrb[0].mxu0 %v81
  %v525 = vpop.f32.mrb[0].mxu0
  %v526 = vadd.f32 %v365, %v525
  %v527 = vpop.f32.mrb[0].mxu0
  %v528 = vpop.f32.mrb[0].mxu0
  %v529 = vadd.f32 %v368, %v528
  %v530 = vpop.f32.mrb[0].mxu0
  %531 = vdwg.mxu0
  %v532 = vsub.f32 %v18, %v406
  %v533 = vsub.f32 %v19, %v409
  %v534 = vsub.f32 %v20, %v414
  %v535 = vsub.f32 %v21, %v417
  %v536 = vsub.f32 %v22, %v422
  %v537 = vsub.f32 %v23, %v425
  %v538 = vsub.f32 %v24, %v430
  %v539 = vsub.f32 %v25, %v433
  %v540 = vsub.f32 %v26, %v438
  %v541 = vsub.f32 %v27, %v441
  %v542 = vsub.f32 %v28, %v446
  %v543 = vsub.f32 %v29, %v449
  %v544 = vsub.f32 %v30, %v454
  %v545 = vsub.f32 %v31, %v457
  %v546 = vsub.f32 %v32, %v462
  %v547 = vsub.f32 %v33, %v465
  %v548 = vsub.f32 %v34, %v470
  %v549 = vsub.f32 %v35, %v473
  %v550 = vsub.f32 %v36, %v478
  %v551 = vsub.f32 %v37, %v481
  %v552 = vsub.f32 %v38, %v486
  %v553 = vsub.f32 %v39, %v489
  %v554 = vsub.f32 %v40, %v494
  %v555 = vsub.f32 %v41, %v497
  %v556 = vsub.f32 %v42, %v502
  %v557 = vsub.f32 %v43, %v505
  %v558 = vsub.f32 %v44, %v510
  %v559 = vsub.f32 %v45, %v513
  %v560 = vsub.f32 %v46, %v518
  %v561 = vsub.f32 %v47, %v521
  %v562 = vsub.f32 %v48, %v526
  %v563 = vsub.f32 %v49, %v529
  %v564 = vmul.f32 %v532, %v532
  %v565 = vmul.f32 %v533, %v533
  %v566 = vmul.f32 %v534, %v534
  %v567 = vmul.f32 %v535, %v535
  %v568 = vmul.f32 %v536, %v536
  %v569 = vmul.f32 %v537, %v537
  %v570 = vmul.f32 %v538, %v538
  %v571 = vmul.f32 %v539, %v539
  %v572 = vmul.f32 %v540, %v540
  %v573 = vmul.f32 %v541, %v541
  %v574 = vmul.f32 %v542, %v542
  %v575 = vmul.f32 %v543, %v543
  %v576 = vmul.f32 %v544, %v544
  %v577 = vmul.f32 %v545, %v545
  %v578 = vmul.f32 %v546, %v546
  %v579 = vmul.f32 %v547, %v547
  %v580 = vmul.f32 %v548, %v548
  %v581 = vmul.f32 %v549, %v549
  %v582 = vmul.f32 %v550, %v550
  %v583 = vmul.f32 %v551, %v551
  %v584 = vmul.f32 %v552, %v552
  %v585 = vmul.f32 %v553, %v553
  %v586 = vmul.f32 %v554, %v554
  %v587 = vmul.f32 %v555, %v555
  %v588 = vmul.f32 %v556, %v556
  %v589 = vmul.f32 %v557, %v557
  %v590 = vmul.f32 %v558, %v558
  %v591 = vmul.f32 %v559, %v559
  %v592 = vmul.f32 %v560, %v560
  %v593 = vmul.f32 %v561, %v561
  %v594 = vmul.f32 %v562, %v562
  %v595 = vmul.f32 %v563, %v563
  %v596 = vpack.c.bf16 %v565, %v564
  %v597 = vpack.c.bf16 %v567, %v566
  %v598 = vpack.c.bf16 %v569, %v568
  %v599 = vpack.c.bf16 %v571, %v570
  %v600 = vpack.c.bf16 %v573, %v572
  %v601 = vpack.c.bf16 %v575, %v574
  %v602 = vpack.c.bf16 %v577, %v576
  %v603 = vpack.c.bf16 %v579, %v578
  %v604 = vpack.c.bf16 %v581, %v580
  %v605 = vpack.c.bf16 %v583, %v582
  %v606 = vpack.c.bf16 %v585, %v584
  %v607 = vpack.c.bf16 %v587, %v586
  %v608 = vpack.c.bf16 %v589, %v588
  %v609 = vpack.c.bf16 %v591, %v590
  %v610 = vpack.c.bf16 %v593, %v592
  %v611 = vpack.c.bf16 %v595, %v594
  %v612 = vunpack.c.l.bf16 %v596
  %v613 = vunpack.c.h.bf16 %v596
  %v614 = vunpack.c.l.bf16 %v597
  %v615 = vunpack.c.h.bf16 %v597
  %v616 = vunpack.c.l.bf16 %v598
  %v617 = vunpack.c.h.bf16 %v598
  %v618 = vunpack.c.l.bf16 %v599
  %v619 = vunpack.c.h.bf16 %v599
  %v620 = vunpack.c.l.bf16 %v600
  %v621 = vunpack.c.h.bf16 %v600
  %v622 = vunpack.c.l.bf16 %v601
  %v623 = vunpack.c.h.bf16 %v601
  %v624 = vunpack.c.l.bf16 %v602
  %v625 = vunpack.c.h.bf16 %v602
  %v626 = vunpack.c.l.bf16 %v603
  %v627 = vunpack.c.h.bf16 %v603
  %v628 = vunpack.c.l.bf16 %v604
  %v629 = vunpack.c.h.bf16 %v604
  %v630 = vunpack.c.l.bf16 %v605
  %v631 = vunpack.c.h.bf16 %v605
  %v632 = vunpack.c.l.bf16 %v606
  %v633 = vunpack.c.h.bf16 %v606
  %v634 = vunpack.c.l.bf16 %v607
  %v635 = vunpack.c.h.bf16 %v607
  %v636 = vunpack.c.l.bf16 %v608
  %v637 = vunpack.c.h.bf16 %v608
  %v638 = vunpack.c.l.bf16 %v609
  %v639 = vunpack.c.h.bf16 %v609
  %v640 = vunpack.c.l.bf16 %v610
  %v641 = vunpack.c.h.bf16 %v610
  %v642 = vunpack.c.l.bf16 %v611
  %v643 = vunpack.c.h.bf16 %v611
  %v644 = vsub.f32 %v564, %v612
  %v645 = vsub.f32 %v565, %v613
  %v646 = vsub.f32 %v566, %v614
  %v647 = vsub.f32 %v567, %v615
  %v648 = vsub.f32 %v568, %v616
  %v649 = vsub.f32 %v569, %v617
  %v650 = vsub.f32 %v570, %v618
  %v651 = vsub.f32 %v571, %v619
  %v652 = vsub.f32 %v572, %v620
  %v653 = vsub.f32 %v573, %v621
  %v654 = vsub.f32 %v574, %v622
  %v655 = vsub.f32 %v575, %v623
  %v656 = vsub.f32 %v576, %v624
  %v657 = vsub.f32 %v577, %v625
  %v658 = vsub.f32 %v578, %v626
  %v659 = vsub.f32 %v579, %v627
  %v660 = vsub.f32 %v580, %v628
  %v661 = vsub.f32 %v581, %v629
  %v662 = vsub.f32 %v582, %v630
  %v663 = vsub.f32 %v583, %v631
  %v664 = vsub.f32 %v584, %v632
  %v665 = vsub.f32 %v585, %v633
  %v666 = vsub.f32 %v586, %v634
  %v667 = vsub.f32 %v587, %v635
  %v668 = vsub.f32 %v588, %v636
  %v669 = vsub.f32 %v589, %v637
  %v670 = vsub.f32 %v590, %v638
  %v671 = vsub.f32 %v591, %v639
  %v672 = vsub.f32 %v592, %v640
  %v673 = vsub.f32 %v593, %v641
  %v674 = vsub.f32 %v594, %v642
  %v675 = vsub.f32 %v595, %v643
  %v676 = vpack.c.bf16 %v645, %v644
  %v677 = vpack.c.bf16 %v647, %v646
  %v678 = vpack.c.bf16 %v649, %v648
  %v679 = vpack.c.bf16 %v651, %v650
  %v680 = vpack.c.bf16 %v653, %v652
  %v681 = vpack.c.bf16 %v655, %v654
  %v682 = vpack.c.bf16 %v657, %v656
  %v683 = vpack.c.bf16 %v659, %v658
  %v684 = vpack.c.bf16 %v661, %v660
  %v685 = vpack.c.bf16 %v663, %v662
  %v686 = vpack.c.bf16 %v665, %v664
  %v687 = vpack.c.bf16 %v667, %v666
  %v688 = vpack.c.bf16 %v669, %v668
  %v689 = vpack.c.bf16 %v671, %v670
  %v690 = vpack.c.bf16 %v673, %v672
  %v691 = vpack.c.bf16 %v675, %v674
  %692 = vmatprep.subr.bf16.mxu0 0
  %693 = vmatpush1.bf16.msra.mxu0 %v194
  %694 = vmatprep.subr.bf16.mxu0 0
  %695 = vmatpush1.bf16.msra.mxu0 %v195
  %696 = vmatprep.subr.bf16.mxu0 0
  %697 = vmatpush1.bf16.msra.mxu0 %v196
  %698 = vmatprep.subr.bf16.mxu0 0
  %699 = vmatpush1.bf16.msra.mxu0 %v197
  %700 = vmatprep.subr.bf16.mxu0 0
  %701 = vmatpush1.bf16.msra.mxu0 %v198
  %702 = vmatprep.subr.bf16.mxu0 0
  %703 = vmatpush1.bf16.msra.mxu0 %v199
  %704 = vmatprep.subr.bf16.mxu0 0
  %705 = vmatpush1.bf16.msra.mxu0 %v200
  %706 = vmatprep.subr.bf16.mxu0 0
  %707 = vmatpush1.bf16.msra.mxu0 %v201
  %708 = vmatprep.subr.bf16.mxu0 0
  %709 = vmatpush1.bf16.msra.mxu0 0
  %710 = vmatprep.subr.bf16.mxu0 0
  %711 = vmatpush1.bf16.msra.mxu0 0
  %712 = vmatprep.subr.bf16.mxu0 0
  %713 = vmatpush1.bf16.msra.mxu0 0
  %714 = vmatprep.subr.bf16.mxu0 0
  %715 = vmatpush1.bf16.msra.mxu0 0
  %716 = vmatprep.subr.bf16.mxu0 0
  %717 = vmatpush1.bf16.msra.mxu0 0
  %718 = vmatprep.subr.bf16.mxu0 0
  %719 = vmatpush1.bf16.msra.mxu0 0
  %720 = vmatprep.subr.bf16.mxu0 0
  %721 = vmatpush1.bf16.msra.mxu0 0
  %722 = vmatprep.subr.bf16.mxu0 0
  %723 = vmatpush1.bf16.msra.mxu0 0
  %724 = vmatprep.mubr.bf16.mxu0 0
  %725 = vmatmul.mubr.bf16.gmra.mrb[0].mxu0 %v676
  %v726 = vpop.f32.mrb[0].mxu0
  %v727 = vadd.f32 0.0, %v726
  %v728 = vpop.f32.mrb[0].mxu0
  %v729 = vpop.f32.mrb[0].mxu0
  %v730 = vadd.f32 0.0, %v729
  %v731 = vpop.f32.mrb[0].mxu0
  %732 = vmatprep.mubr.bf16.mxu0 0
  %733 = vmatmul.mubr.bf16.gmra.mrb[0].mxu0 %v677
  %v734 = vpop.f32.mrb[0].mxu0
  %v735 = vadd.f32 0.0, %v734
  %v736 = vpop.f32.mrb[0].mxu0
  %v737 = vpop.f32.mrb[0].mxu0
  %v738 = vadd.f32 0.0, %v737
  %v739 = vpop.f32.mrb[0].mxu0
  %740 = vmatprep.mubr.bf16.mxu0 0
  %741 = vmatmul.mubr.bf16.gmra.mrb[0].mxu0 %v678
  %v742 = vpop.f32.mrb[0].mxu0
  %v743 = vadd.f32 0.0, %v742
  %v744 = vpop.f32.mrb[0].mxu0
  %v745 = vpop.f32.mrb[0].mxu0
  %v746 = vadd.f32 0.0, %v745
  %v747 = vpop.f32.mrb[0].mxu0
  %748 = vmatprep.mubr.bf16.mxu0 0
  %749 = vmatmul.mubr.bf16.gmra.mrb[0].mxu0 %v679
  %v750 = vpop.f32.mrb[0].mxu0
  %v751 = vadd.f32 0.0, %v750
  %v752 = vpop.f32.mrb[0].mxu0
  %v753 = vpop.f32.mrb[0].mxu0
  %v754 = vadd.f32 0.0, %v753
  %v755 = vpop.f32.mrb[0].mxu0
  %756 = vmatprep.mubr.bf16.mxu0 0
  %757 = vmatmul.mubr.bf16.gmra.mrb[0].mxu0 %v680
  %v758 = vpop.f32.mrb[0].mxu0
  %v759 = vadd.f32 0.0, %v758
  %v760 = vpop.f32.mrb[0].mxu0
  %v761 = vpop.f32.mrb[0].mxu0
  %v762 = vadd.f32 0.0, %v761
  %v763 = vpop.f32.mrb[0].mxu0
  %764 = vmatprep.mubr.bf16.mxu0 0
  %765 = vmatmul.mubr.bf16.gmra.mrb[0].mxu0 %v681
  %v766 = vpop.f32.mrb[0].mxu0
  %v767 = vadd.f32 0.0, %v766
  %v768 = vpop.f32.mrb[0].mxu0
  %v769 = vpop.f32.mrb[0].mxu0
  %v770 = vadd.f32 0.0, %v769
  %v771 = vpop.f32.mrb[0].mxu0
  %772 = vmatprep.mubr.bf16.mxu0 0
  %773 = vmatmul.mubr.bf16.gmra.mrb[0].mxu0 %v682
  %v774 = vpop.f32.mrb[0].mxu0
  %v775 = vadd.f32 0.0, %v774
  %v776 = vpop.f32.mrb[0].mxu0
  %v777 = vpop.f32.mrb[0].mxu0
  %v778 = vadd.f32 0.0, %v777
  %v779 = vpop.f32.mrb[0].mxu0
  %780 = vmatprep.mubr.bf16.mxu0 0
  %781 = vmatmul.mubr.bf16.gmra.mrb[0].mxu0 %v683
  %v782 = vpop.f32.mrb[0].mxu0
  %v783 = vadd.f32 0.0, %v782
  %v784 = vpop.f32.mrb[0].mxu0
  %v785 = vpop.f32.mrb[0].mxu0
  %v786 = vadd.f32 0.0, %v785
  %v787 = vpop.f32.mrb[0].mxu0
  %788 = vmatprep.mubr.bf16.mxu0 0
  %789 = vmatmul.mubr.bf16.gmra.mrb[0].mxu0 %v684
  %v790 = vpop.f32.mrb[0].mxu0
  %v791 = vadd.f32 0.0, %v790
  %v792 = vpop.f32.mrb[0].mxu0
  %v793 = vpop.f32.mrb[0].mxu0
  %v794 = vadd.f32 0.0, %v793
  %v795 = vpop.f32.mrb[0].mxu0
  %796 = vmatprep.mubr.bf16.mxu0 0
  %797 = vmatmul.mubr.bf16.gmra.mrb[0].mxu0 %v685
  %v798 = vpop.f32.mrb[0].mxu0
  %v799 = vadd.f32 0.0, %v798
  %v800 = vpop.f32.mrb[0].mxu0
  %v801 = vpop.f32.mrb[0].mxu0
  %v802 = vadd.f32 0.0, %v801
  %v803 = vpop.f32.mrb[0].mxu0
  %804 = vmatprep.mubr.bf16.mxu0 0
  %805 = vmatmul.mubr.bf16.gmra.mrb[0].mxu0 %v686
  %v806 = vpop.f32.mrb[0].mxu0
  %v807 = vadd.f32 0.0, %v806
  %v808 = vpop.f32.mrb[0].mxu0
  %v809 = vpop.f32.mrb[0].mxu0
  %v810 = vadd.f32 0.0, %v809
  %v811 = vpop.f32.mrb[0].mxu0
  %812 = vmatprep.mubr.bf16.mxu0 0
  %813 = vmatmul.mubr.bf16.gmra.mrb[0].mxu0 %v687
  %v814 = vpop.f32.mrb[0].mxu0
  %v815 = vadd.f32 0.0, %v814
  %v816 = vpop.f32.mrb[0].mxu0
  %v817 = vpop.f32.mrb[0].mxu0
  %v818 = vadd.f32 0.0, %v817
  %v819 = vpop.f32.mrb[0].mxu0
  %820 = vmatprep.mubr.bf16.mxu0 0
  %821 = vmatmul.mubr.bf16.gmra.mrb[0].mxu0 %v688
  %v822 = vpop.f32.mrb[0].mxu0
  %v823 = vadd.f32 0.0, %v822
  %v824 = vpop.f32.mrb[0].mxu0
  %v825 = vpop.f32.mrb[0].mxu0
  %v826 = vadd.f32 0.0, %v825
  %v827 = vpop.f32.mrb[0].mxu0
  %828 = vmatprep.mubr.bf16.mxu0 0
  %829 = vmatmul.mubr.bf16.gmra.mrb[0].mxu0 %v689
  %v830 = vpop.f32.mrb[0].mxu0
  %v831 = vadd.f32 0.0, %v830
  %v832 = vpop.f32.mrb[0].mxu0
  %v833 = vpop.f32.mrb[0].mxu0
  %v834 = vadd.f32 0.0, %v833
  %v835 = vpop.f32.mrb[0].mxu0
  %836 = vmatprep.mubr.bf16.mxu0 0
  %837 = vmatmul.mubr.bf16.gmra.mrb[0].mxu0 %v690
  %v838 = vpop.f32.mrb[0].mxu0
  %v839 = vadd.f32 0.0, %v838
  %v840 = vpop.f32.mrb[0].mxu0
  %v841 = vpop.f32.mrb[0].mxu0
  %v842 = vadd.f32 0.0, %v841
  %v843 = vpop.f32.mrb[0].mxu0
  %844 = vmatprep.mubr.bf16.mxu0 0
  %845 = vmatmul.mubr.bf16.gmra.mrb[0].mxu0 %v691
  %v846 = vpop.f32.mrb[0].mxu0
  %v847 = vadd.f32 0.0, %v846
  %v848 = vpop.f32.mrb[0].mxu0
  %v849 = vpop.f32.mrb[0].mxu0
  %v850 = vadd.f32 0.0, %v849
  %v851 = vpop.f32.mrb[0].mxu0
  %852 = vdwg.mxu0
  %853 = vmatprep.subr.bf16.mxu0 0
  %854 = vmatpush1.bf16.msra.mxu0 %v194
  %855 = vmatprep.subr.bf16.mxu0 0
  %856 = vmatpush1.bf16.msra.mxu0 %v195
  %857 = vmatprep.subr.bf16.mxu0 0
  %858 = vmatpush1.bf16.msra.mxu0 %v196
  %859 = vmatprep.subr.bf16.mxu0 0
  %860 = vmatpush1.bf16.msra.mxu0 %v197
  %861 = vmatprep.subr.bf16.mxu0 0
  %862 = vmatpush1.bf16.msra.mxu0 %v198
  %863 = vmatprep.subr.bf16.mxu0 0
  %864 = vmatpush1.bf16.msra.mxu0 %v199
  %865 = vmatprep.subr.bf16.mxu0 0
  %866 = vmatpush1.bf16.msra.mxu0 %v200
  %867 = vmatprep.subr.bf16.mxu0 0
  %868 = vmatpush1.bf16.msra.mxu0 %v201
  %869 = vmatprep.subr.bf16.mxu0 0
  %870 = vmatpush1.bf16.msra.mxu0 0
  %871 = vmatprep.subr.bf16.mxu0 0
  %872 = vmatpush1.bf16.msra.mxu0 0
  %873 = vmatprep.subr.bf16.mxu0 0
  %874 = vmatpush1.bf16.msra.mxu0 0
  %875 = vmatprep.subr.bf16.mxu0 0
  %876 = vmatpush1.bf16.msra.mxu0 0
  %877 = vmatprep.subr.bf16.mxu0 0
  %878 = vmatpush1.bf16.msra.mxu0 0
  %879 = vmatprep.subr.bf16.mxu0 0
  %880 = vmatpush1.bf16.msra.mxu0 0
  %881 = vmatprep.subr.bf16.mxu0 0
  %882 = vmatpush1.bf16.msra.mxu0 0
  %883 = vmatprep.subr.bf16.mxu0 0
  %884 = vmatpush1.bf16.msra.mxu0 0
  %885 = vmatprep.mubr.bf16.mxu0 0
  %886 = vmatmul.mubr.bf16.gmra.mrb[0].mxu0 %v596
  %v887 = vpop.f32.mrb[0].mxu0
  %v888 = vadd.f32 %v727, %v887
  %v889 = vpop.f32.mrb[0].mxu0
  %v890 = vpop.f32.mrb[0].mxu0
  %v891 = vadd.f32 %v730, %v890
  %v892 = vpop.f32.mrb[0].mxu0
  %893 = vmatprep.mubr.bf16.mxu0 0
  %894 = vmatmul.mubr.bf16.gmra.mrb[0].mxu0 %v597
  %v895 = vpop.f32.mrb[0].mxu0
  %v896 = vadd.f32 %v735, %v895
  %v897 = vpop.f32.mrb[0].mxu0
  %v898 = vpop.f32.mrb[0].mxu0
  %v899 = vadd.f32 %v738, %v898
  %v900 = vpop.f32.mrb[0].mxu0
  %901 = vmatprep.mubr.bf16.mxu0 0
  %902 = vmatmul.mubr.bf16.gmra.mrb[0].mxu0 %v598
  %v903 = vpop.f32.mrb[0].mxu0
  %v904 = vadd.f32 %v743, %v903
  %v905 = vpop.f32.mrb[0].mxu0
  %v906 = vpop.f32.mrb[0].mxu0
  %v907 = vadd.f32 %v746, %v906
  %v908 = vpop.f32.mrb[0].mxu0
  %909 = vmatprep.mubr.bf16.mxu0 0
  %910 = vmatmul.mubr.bf16.gmra.mrb[0].mxu0 %v599
  %v911 = vpop.f32.mrb[0].mxu0
  %v912 = vadd.f32 %v751, %v911
  %v913 = vpop.f32.mrb[0].mxu0
  %v914 = vpop.f32.mrb[0].mxu0
  %v915 = vadd.f32 %v754, %v914
  %v916 = vpop.f32.mrb[0].mxu0
  %917 = vmatprep.mubr.bf16.mxu0 0
  %918 = vmatmul.mubr.bf16.gmra.mrb[0].mxu0 %v600
  %v919 = vpop.f32.mrb[0].mxu0
  %v920 = vadd.f32 %v759, %v919
  %v921 = vpop.f32.mrb[0].mxu0
  %v922 = vpop.f32.mrb[0].mxu0
  %v923 = vadd.f32 %v762, %v922
  %v924 = vpop.f32.mrb[0].mxu0
  %925 = vmatprep.mubr.bf16.mxu0 0
  %926 = vmatmul.mubr.bf16.gmra.mrb[0].mxu0 %v601
  %v927 = vpop.f32.mrb[0].mxu0
  %v928 = vadd.f32 %v767, %v927
  %v929 = vpop.f32.mrb[0].mxu0
  %v930 = vpop.f32.mrb[0].mxu0
  %v931 = vadd.f32 %v770, %v930
  %v932 = vpop.f32.mrb[0].mxu0
  %933 = vmatprep.mubr.bf16.mxu0 0
  %934 = vmatmul.mubr.bf16.gmra.mrb[0].mxu0 %v602
  %v935 = vpop.f32.mrb[0].mxu0
  %v936 = vadd.f32 %v775, %v935
  %v937 = vpop.f32.mrb[0].mxu0
  %v938 = vpop.f32.mrb[0].mxu0
  %v939 = vadd.f32 %v778, %v938
  %v940 = vpop.f32.mrb[0].mxu0
  %941 = vmatprep.mubr.bf16.mxu0 0
  %942 = vmatmul.mubr.bf16.gmra.mrb[0].mxu0 %v603
  %v943 = vpop.f32.mrb[0].mxu0
  %v944 = vadd.f32 %v783, %v943
  %v945 = vpop.f32.mrb[0].mxu0
  %v946 = vpop.f32.mrb[0].mxu0
  %v947 = vadd.f32 %v786, %v946
  %v948 = vpop.f32.mrb[0].mxu0
  %949 = vmatprep.mubr.bf16.mxu0 0
  %950 = vmatmul.mubr.bf16.gmra.mrb[0].mxu0 %v604
  %v951 = vpop.f32.mrb[0].mxu0
  %v952 = vadd.f32 %v791, %v951
  %v953 = vpop.f32.mrb[0].mxu0
  %v954 = vpop.f32.mrb[0].mxu0
  %v955 = vadd.f32 %v794, %v954
  %v956 = vpop.f32.mrb[0].mxu0
  %957 = vmatprep.mubr.bf16.mxu0 0
  %958 = vmatmul.mubr.bf16.gmra.mrb[0].mxu0 %v605
  %v959 = vpop.f32.mrb[0].mxu0
  %v960 = vadd.f32 %v799, %v959
  %v961 = vpop.f32.mrb[0].mxu0
  %v962 = vpop.f32.mrb[0].mxu0
  %v963 = vadd.f32 %v802, %v962
  %v964 = vpop.f32.mrb[0].mxu0
  %965 = vmatprep.mubr.bf16.mxu0 0
  %966 = vmatmul.mubr.bf16.gmra.mrb[0].mxu0 %v606
  %v967 = vpop.f32.mrb[0].mxu0
  %v968 = vadd.f32 %v807, %v967
  %v969 = vpop.f32.mrb[0].mxu0
  %v970 = vpop.f32.mrb[0].mxu0
  %v971 = vadd.f32 %v810, %v970
  %v972 = vpop.f32.mrb[0].mxu0
  %973 = vmatprep.mubr.bf16.mxu0 0
  %974 = vmatmul.mubr.bf16.gmra.mrb[0].mxu0 %v607
  %v975 = vpop.f32.mrb[0].mxu0
  %v976 = vadd.f32 %v815, %v975
  %v977 = vpop.f32.mrb[0].mxu0
  %v978 = vpop.f32.mrb[0].mxu0
  %v979 = vadd.f32 %v818, %v978
  %v980 = vpop.f32.mrb[0].mxu0
  %981 = vmatprep.mubr.bf16.mxu0 0
  %982 = vmatmul.mubr.bf16.gmra.mrb[0].mxu0 %v608
  %v983 = vpop.f32.mrb[0].mxu0
  %v984 = vadd.f32 %v823, %v983
  %v985 = vpop.f32.mrb[0].mxu0
  %v986 = vpop.f32.mrb[0].mxu0
  %v987 = vadd.f32 %v826, %v986
  %v988 = vpop.f32.mrb[0].mxu0
  %989 = vmatprep.mubr.bf16.mxu0 0
  %990 = vmatmul.mubr.bf16.gmra.mrb[0].mxu0 %v609
  %v991 = vpop.f32.mrb[0].mxu0
  %v992 = vadd.f32 %v831, %v991
  %v993 = vpop.f32.mrb[0].mxu0
  %v994 = vpop.f32.mrb[0].mxu0
  %v995 = vadd.f32 %v834, %v994
  %v996 = vpop.f32.mrb[0].mxu0
  %997 = vmatprep.mubr.bf16.mxu0 0
  %998 = vmatmul.mubr.bf16.gmra.mrb[0].mxu0 %v610
  %v999 = vpop.f32.mrb[0].mxu0
  %v1000 = vadd.f32 %v839, %v999
  %v1001 = vpop.f32.mrb[0].mxu0
  %v1002 = vpop.f32.mrb[0].mxu0
  %v1003 = vadd.f32 %v842, %v1002
  %v1004 = vpop.f32.mrb[0].mxu0
  %1005 = vmatprep.mubr.bf16.mxu0 0
  %1006 = vmatmul.mubr.bf16.gmra.mrb[0].mxu0 %v611
  %v1007 = vpop.f32.mrb[0].mxu0
  %v1008 = vadd.f32 %v847, %v1007
  %v1009 = vpop.f32.mrb[0].mxu0
  %v1010 = vpop.f32.mrb[0].mxu0
  %v1011 = vadd.f32 %v850, %v1010
  %v1012 = vpop.f32.mrb[0].mxu0
  %1013 = vdwg.mxu0
  %v1014 = vadd.f32 %v888, 1e-05
  %v1015 = vadd.f32 %v891, 1e-05
  %v1016 = vadd.f32 %v896, 1e-05
  %v1017 = vadd.f32 %v899, 1e-05
  %v1018 = vadd.f32 %v904, 1e-05
  %v1019 = vadd.f32 %v907, 1e-05
  %v1020 = vadd.f32 %v912, 1e-05
  %v1021 = vadd.f32 %v915, 1e-05
  %v1022 = vadd.f32 %v920, 1e-05
  %v1023 = vadd.f32 %v923, 1e-05
  %v1024 = vadd.f32 %v928, 1e-05
  %v1025 = vadd.f32 %v931, 1e-05
  %v1026 = vadd.f32 %v936, 1e-05
  %v1027 = vadd.f32 %v939, 1e-05
  %v1028 = vadd.f32 %v944, 1e-05
  %v1029 = vadd.f32 %v947, 1e-05
  %v1030 = vadd.f32 %v952, 1e-05
  %v1031 = vadd.f32 %v955, 1e-05
  %v1032 = vadd.f32 %v960, 1e-05
  %v1033 = vadd.f32 %v963, 1e-05
  %v1034 = vadd.f32 %v968, 1e-05
  %v1035 = vadd.f32 %v971, 1e-05
  %v1036 = vadd.f32 %v976, 1e-05
  %v1037 = vadd.f32 %v979, 1e-05
  %v1038 = vadd.f32 %v984, 1e-05
  %v1039 = vadd.f32 %v987, 1e-05
  %v1040 = vadd.f32 %v992, 1e-05
  %v1041 = vadd.f32 %v995, 1e-05
  %v1042 = vadd.f32 %v1000, 1e-05
  %v1043 = vadd.f32 %v1003, 1e-05
  %v1044 = vadd.f32 %v1008, 1e-05
  %v1045 = vadd.f32 %v1011, 1e-05
  %v1046 = vrsqrt.pop %v1014
  %v1047 = vrsqrt.pop %v1015
  %v1048 = vrsqrt.pop %v1016
  %v1049 = vrsqrt.pop %v1017
  %v1050 = vrsqrt.pop %v1018
  %v1051 = vrsqrt.pop %v1019
  %v1052 = vrsqrt.pop %v1020
  %v1053 = vrsqrt.pop %v1021
  %v1054 = vrsqrt.pop %v1022
  %v1055 = vrsqrt.pop %v1023
  %v1056 = vrsqrt.pop %v1024
  %v1057 = vrsqrt.pop %v1025
  %v1058 = vrsqrt.pop %v1026
  %v1059 = vrsqrt.pop %v1027
  %v1060 = vrsqrt.pop %v1028
  %v1061 = vrsqrt.pop %v1029
  %v1062 = vrsqrt.pop %v1030
  %v1063 = vrsqrt.pop %v1031
  %v1064 = vrsqrt.pop %v1032
  %v1065 = vrsqrt.pop %v1033
  %v1066 = vrsqrt.pop %v1034
  %v1067 = vrsqrt.pop %v1035
  %v1068 = vrsqrt.pop %v1036
  %v1069 = vrsqrt.pop %v1037
  %v1070 = vrsqrt.pop %v1038
  %v1071 = vrsqrt.pop %v1039
  %v1072 = vrsqrt.pop %v1040
  %v1073 = vrsqrt.pop %v1041
  %v1074 = vrsqrt.pop %v1042
  %v1075 = vrsqrt.pop %v1043
  %v1076 = vrsqrt.pop %v1044
  %v1077 = vrsqrt.pop %v1045
  %v1078 = vmul.f32 %v532, %v1046
  %v1079 = vmul.f32 %v533, %v1047
  %v1080 = vmul.f32 %v534, %v1048
  %v1081 = vmul.f32 %v535, %v1049
  %v1082 = vmul.f32 %v536, %v1050
  %v1083 = vmul.f32 %v537, %v1051
  %v1084 = vmul.f32 %v538, %v1052
  %v1085 = vmul.f32 %v539, %v1053
  %v1086 = vmul.f32 %v540, %v1054
  %v1087 = vmul.f32 %v541, %v1055
  %v1088 = vmul.f32 %v542, %v1056
  %v1089 = vmul.f32 %v543, %v1057
  %v1090 = vmul.f32 %v544, %v1058
  %v1091 = vmul.f32 %v545, %v1059
  %v1092 = vmul.f32 %v546, %v1060
  %v1093 = vmul.f32 %v547, %v1061
  %v1094 = vmul.f32 %v548, %v1062
  %v1095 = vmul.f32 %v549, %v1063
  %v1096 = vmul.f32 %v550, %v1064
  %v1097 = vmul.f32 %v551, %v1065
  %v1098 = vmul.f32 %v552, %v1066
  %v1099 = vmul.f32 %v553, %v1067
  %v1100 = vmul.f32 %v554, %v1068
  %v1101 = vmul.f32 %v555, %v1069
  %v1102 = vmul.f32 %v556, %v1070
  %v1103 = vmul.f32 %v557, %v1071
  %v1104 = vmul.f32 %v558, %v1072
  %v1105 = vmul.f32 %v559, %v1073
  %v1106 = vmul.f32 %v560, %v1074
  %v1107 = vmul.f32 %v561, %v1075
  %v1108 = vmul.f32 %v562, %v1076
  %v1109 = vmul.f32 %v563, %v1077
  %v1110 = vld [vmem:[%s1] sm:$0x1]
  %v1112 = vlaneseq
  %v1113 = vshrl.u32 %v1112, 7
  %v1114 = vsub.s32 0, %v1113
  %v1115 = vrot.slane %v1110, %v1114
  %v1117 = vmul.f32 %v1078, %v1115
  %v1118 = vmul.f32 %v1079, %v1115
  %v1119 = vmul.f32 %v1080, %v1115
  %v1120 = vmul.f32 %v1081, %v1115
  %v1121 = vmul.f32 %v1082, %v1115
  %v1122 = vmul.f32 %v1083, %v1115
  %v1123 = vmul.f32 %v1084, %v1115
  %v1124 = vmul.f32 %v1085, %v1115
  %v1125 = vmul.f32 %v1086, %v1115
  %v1126 = vmul.f32 %v1087, %v1115
  %v1127 = vmul.f32 %v1088, %v1115
  %v1128 = vmul.f32 %v1089, %v1115
  %v1129 = vmul.f32 %v1090, %v1115
  %v1130 = vmul.f32 %v1091, %v1115
  %v1131 = vmul.f32 %v1092, %v1115
  %v1132 = vmul.f32 %v1093, %v1115
  %v1133 = vmul.f32 %v1094, %v1115
  %v1134 = vmul.f32 %v1095, %v1115
  %v1135 = vmul.f32 %v1096, %v1115
  %v1136 = vmul.f32 %v1097, %v1115
  %v1137 = vmul.f32 %v1098, %v1115
  %v1138 = vmul.f32 %v1099, %v1115
  %v1139 = vmul.f32 %v1100, %v1115
  %v1140 = vmul.f32 %v1101, %v1115
  %v1141 = vmul.f32 %v1102, %v1115
  %v1142 = vmul.f32 %v1103, %v1115
  %v1143 = vmul.f32 %v1104, %v1115
  %v1144 = vmul.f32 %v1105, %v1115
  %v1145 = vmul.f32 %v1106, %v1115
  %v1146 = vmul.f32 %v1107, %v1115
  %v1147 = vmul.f32 %v1108, %v1115
  %v1148 = vmul.f32 %v1109, %v1115
  %v1149 = vld [vmem:[%s2] sm:$0x1]
  %v1151 = vlaneseq
  %v1152 = vshrl.u32 %v1151, 7
  %v1153 = vsub.s32 0, %v1152
  %v1154 = vrot.slane %v1149, %v1153
  %v1156 = vadd.f32 %v1117, %v1154
  %v1157 = vadd.f32 %v1118, %v1154
  %v1158 = vadd.f32 %v1119, %v1154
  %v1159 = vadd.f32 %v1120, %v1154
  %v1160 = vadd.f32 %v1121, %v1154
  %v1161 = vadd.f32 %v1122, %v1154
  %v1162 = vadd.f32 %v1123, %v1154
  %v1163 = vadd.f32 %v1124, %v1154
  %v1164 = vadd.f32 %v1125, %v1154
  %v1165 = vadd.f32 %v1126, %v1154
  %v1166 = vadd.f32 %v1127, %v1154
  %v1167 = vadd.f32 %v1128, %v1154
  %v1168 = vadd.f32 %v1129, %v1154
  %v1169 = vadd.f32 %v1130, %v1154
  %v1170 = vadd.f32 %v1131, %v1154
  %v1171 = vadd.f32 %v1132, %v1154
  %v1172 = vadd.f32 %v1133, %v1154
  %v1173 = vadd.f32 %v1134, %v1154
  %v1174 = vadd.f32 %v1135, %v1154
  %v1175 = vadd.f32 %v1136, %v1154
  %v1176 = vadd.f32 %v1137, %v1154
  %v1177 = vadd.f32 %v1138, %v1154
  %v1178 = vadd.f32 %v1139, %v1154
  %v1179 = vadd.f32 %v1140, %v1154
  %v1180 = vadd.f32 %v1141, %v1154
  %v1181 = vadd.f32 %v1142, %v1154
  %v1182 = vadd.f32 %v1143, %v1154
  %v1183 = vadd.f32 %v1144, %v1154
  %v1184 = vadd.f32 %v1145, %v1154
  %v1185 = vadd.f32 %v1146, %v1154
  %v1186 = vadd.f32 %v1147, %v1154
  %v1187 = vadd.f32 %v1148, %v1154
  %1188 = vst [vmem:[%s4] sm:$0xff] %v1156
  %1189 = vst [vmem:[%s4 + $0x8] sm:$0xff] %v1157
  %1190 = vst [vmem:[%s4 + $0x10] sm:$0xff] %v1158
  %1191 = vst [vmem:[%s4 + $0x18] sm:$0xff] %v1159
  %1192 = vst [vmem:[%s4 + $0x20] sm:$0xff] %v1160
  %1193 = vst [vmem:[%s4 + $0x28] sm:$0xff] %v1161
  %1194 = vst [vmem:[%s4 + $0x30] sm:$0xff] %v1162
  %1195 = vst [vmem:[%s4 + $0x38] sm:$0xff] %v1163
  %1196 = vst [vmem:[%s4 + $0x40] sm:$0xff] %v1164
  %1197 = vst [vmem:[%s4 + $0x48] sm:$0xff] %v1165
  %1198 = vst [vmem:[%s4 + $0x50] sm:$0xff] %v1166
  %1199 = vst [vmem:[%s4 + $0x58] sm:$0xff] %v1167
  %1200 = vst [vmem:[%s4 + $0x60] sm:$0xff] %v1168
  %1201 = vst [vmem:[%s4 + $0x68] sm:$0xff] %v1169
  %1202 = vst [vmem:[%s4 + $0x70] sm:$0xff] %v1170
  %1203 = vst [vmem:[%s4 + $0x78] sm:$0xff] %v1171
  %1204 = vst [vmem:[%s4 + $0x80] sm:$0xff] %v1172
  %1205 = vst [vmem:[%s4 + $0x88] sm:$0xff] %v1173
  %1206 = vst [vmem:[%s4 + $0x90] sm:$0xff] %v1174
  %1207 = vst [vmem:[%s4 + $0x98] sm:$0xff] %v1175
  %1208 = vst [vmem:[%s4 + $0xa0] sm:$0xff] %v1176
  %1209 = vst [vmem:[%s4 + $0xa8] sm:$0xff] %v1177
  %1210 = vst [vmem:[%s4 + $0xb0] sm:$0xff] %v1178
  %1211 = vst [vmem:[%s4 + $0xb8] sm:$0xff] %v1179
  %1212 = vst [vmem:[%s4 + $0xc0] sm:$0xff] %v1180
  %1213 = vst [vmem:[%s4 + $0xc8] sm:$0xff] %v1181
  %1214 = vst [vmem:[%s4 + $0xd0] sm:$0xff] %v1182
  %1215 = vst [vmem:[%s4 + $0xd8] sm:$0xff] %v1183
  %1216 = vst [vmem:[%s4 + $0xe0] sm:$0xff] %v1184
  %1217 = vst [vmem:[%s4 + $0xe8] sm:$0xff] %v1185
  %1218 = vst [vmem:[%s4 + $0xf0] sm:$0xff] %v1186
  %1219 = vst [vmem:[%s4 + $0xf8] sm:$0xff] %v1187
  // Predicated region
  $region18: #{withbias_layernorm.1} parent=0 // pred_check
    _
  $region19: #{withbias_layernorm.1} parent=0 // pred_check_branch
    %1221 = sbr.rel (0) target = $region21
  $region20: #{withbias_layernorm.1} parent=0 // pred_region
    _
  $region21: #{withbias_layernorm.1} parent=0 // pred_fallthru
    _
  // Predicated region
  $region22: #{withbias_layernorm.1} parent=0 // pred_check
    _
  $region23: #{withbias_layernorm.1} parent=0 // pred_check_branch
    %1223 = sbr.rel (0) target = $region25
  $region24: #{withbias_layernorm.1} parent=0 // pred_region
    _
  $region25: #{withbias_layernorm.1} parent=0 // pred_fallthru
    _

</llo_original>
